<compile_context>
chip_gen: v7x
topology: tpu7x:2x2x1
jax: 0.10.0
libtpu: 0.0.40
codegen_flags: <defaults>
</compile_context>

<pallas_src>
from functools import partial

import jax
import jax.numpy as jnp
from jax.experimental import pallas as pl
from jax.experimental.pallas import tpu as pltpu


def _round_up(x, m):
    return ((x + m - 1) // m) * m


def minkowski_kernel(D, T, out_rows,
                     xy_ref,
                     w0_ref, b0_ref, w1_ref, b1_ref, w2_ref, b2_ref,
                     out_ref):
    """Fused stacked MLP encoder + Minkowski pseudo-distance for one tile."""
    _, bm, N = xy_ref.shape

    # (2, bm, N) -> (2*bm, N): pure major-dim merge (bm % 8 == 0), no copy.
    xy = xy_ref[...].reshape(2 * bm, N)          # already bf16 (wrapper cast)

    # Stacked encoder pass: bf16 MXU inputs, f32 accumulation, f32 bias/ReLU.
    h = jnp.dot(xy, w0_ref[...], preferred_element_type=jnp.float32) + b0_ref[...]
    h = jnp.maximum(h, 0.0).astype(jnp.bfloat16)
    h = jnp.dot(h, w1_ref[...], preferred_element_type=jnp.float32) + b1_ref[...]
    h = jnp.maximum(h, 0.0).astype(jnp.bfloat16)
    e = jnp.dot(h, w2_ref[...], preferred_element_type=jnp.float32) + b2_ref[...]

    ex = e[:bm]                                   # (bm, DT_pad) encoded x
    ey = e[bm:]                                   # (bm, DT_pad) encoded y

    # Minkowski distance as a single metric-weighted reduction.  Padded
    # columns of e are exactly zero for both ex and ey (w2/b2 zero-padded),
    # so (ex - ey) vanishes there and a single select suffices for g.
    dt_pad = e.shape[1]
    lane = jax.lax.broadcasted_iota(jnp.int32, (1, dt_pad), 1)
    g = jnp.where(lane < D, 1.0, -1.0).astype(jnp.float32)
    d = ex - ey
    dist = jnp.sum(g * d * d, axis=-1, keepdims=True)          # (bm, 1)

    ex_t = ex[:, D:D + T]                                       # (bm, T)
    ey_t = ey[:, D:D + T]                                       # (bm, T)

    parts = [dist, ex_t, ey_t]
    pad_w = out_rows - 1 - 2 * T
    if pad_w:
        parts.append(jnp.zeros((bm, pad_w), jnp.float32))

    # Transposed, lane-dense store: rows = [dist | ex_t | ey_t | 0], cols = batch.
    out_ref[...] = jnp.concatenate(parts, axis=-1).T            # (out_rows, bm)


def init_params(key, N, H, DT):
    """Torch-Linear-like init in the module's true (unpadded) dimensions."""
    ks = jax.random.split(key, 6)
    s0 = 1.0 / jnp.sqrt(N)
    s1 = 1.0 / jnp.sqrt(H)
    return {
        "w0": jax.random.uniform(ks[0], (N, H), jnp.float32, -s0, s0),
        "b0": jax.random.uniform(ks[1], (1, H), jnp.float32, -s0, s0),
        "w1": jax.random.uniform(ks[2], (H, H), jnp.float32, -s1, s1),
        "b1": jax.random.uniform(ks[3], (1, H), jnp.float32, -s1, s1),
        "w2": jax.random.uniform(ks[4], (H, DT), jnp.float32, -s1, s1),
        "b2": jax.random.uniform(ks[5], (1, DT), jnp.float32, -s1, s1),
    }


def prepare_params(params, *, lane=128):
    """Zero-pad hidden/output dims to multiples of 128; cast weights to bf16."""
    N, H = params["w0"].shape
    DT = params["w2"].shape[1]
    Hp = _round_up(H, lane)
    DTp = _round_up(DT, lane)

    def pad_to(a, shape):
        return jnp.pad(a, [(0, s - d) for s, d in zip(shape, a.shape)])

    return {
        "w0": pad_to(params["w0"], (N, Hp)).astype(jnp.bfloat16),
        "b0": pad_to(params["b0"], (1, Hp)).astype(jnp.float32),
        "w1": pad_to(params["w1"], (Hp, Hp)).astype(jnp.bfloat16),
        "b1": pad_to(params["b1"], (1, Hp)).astype(jnp.float32),
        "w2": pad_to(params["w2"], (Hp, DTp)).astype(jnp.bfloat16),
        "b2": pad_to(params["b2"], (1, DTp)).astype(jnp.float32),
    }


def _num_tensorcores():
    """Best-effort TensorCores-per-device: v7x has 2, v5e/v6e have 1.
    Only a perf heuristic; a wrong guess never affects correctness."""
    try:
        kind = jax.devices()[0].device_kind.lower()
    except Exception:
        return 1
    return 2 if "v7" in kind else 1


def _choose_batch_tile(B, num_cores, cap=2048):
    """Batch is the LANE axis of the transposed output, so bm is always a
    multiple of 128 (unmasked stores).  1-TC chips (v5e/v6e): single step for
    small B.  2-TC v7x: an even number of >=2 steps so both cores get equal
    tiles.  cap=2048 amortizes per-step overhead; VMEM stays a few MiB."""
    B_pad = _round_up(max(B, 1), 128)
    if num_cores >= 2 and B_pad > 128:
        steps = max(2, -(-B_pad // cap))
        steps = _round_up(steps, 2)
    else:
        steps = max(1, -(-B_pad // cap))
    bm = _round_up(-(-B_pad // steps), 128)
    return bm, bm * steps


def minkowski_forward(x, y, prepped, *, D, T):
    B, N = x.shape
    Hp = prepped["w0"].shape[1]
    DTp = prepped["w2"].shape[1]
    out_rows = max(8, _round_up(1 + 2 * T, 8))     # sublane-padded output rows

    bm, B_pad = _choose_batch_tile(B, _num_tensorcores())

    # Wrapper-side stacking + bf16 pre-cast: one (2, B_pad, N) input stream,
    # no in-kernel concat copy, half the input HBM->VMEM bytes.
    xy = jnp.stack([x, y], axis=0).astype(jnp.bfloat16)
    if B_pad != B:
        xy = jnp.pad(xy, ((0, 0), (0, B_pad - B), (0, 0)))

    kern = partial(minkowski_kernel, D, T, out_rows)

    def resident(shape):                     # constant index -> stays in VMEM
        return pl.BlockSpec(shape, lambda i: (0, 0))

    out = pl.pallas_call(
        kern,
        out_shape=jax.ShapeDtypeStruct((out_rows, B_pad), jnp.float32),
        grid_spec=pltpu.PrefetchScalarGridSpec(
            num_scalar_prefetch=0,
            grid=(B_pad // bm,),
            in_specs=[
                pl.BlockSpec((2, bm, N), lambda i: (0, i, 0)),   # stacked x/y
                resident((N, Hp)),   resident((1, Hp)),          # layer 0
                resident((Hp, Hp)),  resident((1, Hp)),          # layer 1
                resident((Hp, DTp)), resident((1, DTp)),         # output layer
            ],
            out_specs=pl.BlockSpec((out_rows, bm), lambda i: (0, i)),
        ),
        compiler_params=pltpu.CompilerParams(
            dimension_semantics=("parallel",)),
    )(xy,
      prepped["w0"], prepped["b0"],
      prepped["w1"], prepped["b1"],
      prepped["w2"], prepped["b2"])

    dist = out[0:1, :B].T                     # (B, 1)
    px = out[1:1 + T, :B].T                   # (B, T)
    py = out[1 + T:1 + 2 * T, :B].T           # (B, T)
    return dist, px, py


def reference_forward_f32(x, y, params, *, D, T):
    """Pure-f32 mirror of the PyTorch module semantics."""
    def encode(v):
        h = jnp.maximum(v @ params["w0"] + params["b0"], 0.0)
        h = jnp.maximum(h @ params["w1"] + params["b1"], 0.0)
        return h @ params["w2"] + params["b2"]

    ex, ey = encode(x), encode(y)
    ex_s, ex_t = ex[:, :D], ex[:, D:]
    ey_s, ey_t = ey[:, :D], ey[:, D:]

    def pd(a, b):
        return jnp.sum(a * a, -1) + jnp.sum(b * b, -1) - 2 * jnp.sum(a * b, -1)

    dist = pd(ex_s, ey_s) - pd(ex_t, ey_t)
    return dist[:, None], ex_t, ey_t


def reference_forward_mixed(x, y, prepped, *, D, T):
    """Same bf16-input / f32-accumulate policy as the kernel (tight check)."""
    def mm(a, w):
        return jnp.dot(a.astype(jnp.bfloat16), w,
                       preferred_element_type=jnp.float32)

    def encode(v):
        h = jnp.maximum(mm(v, prepped["w0"]) + prepped["b0"], 0.0)
        h = jnp.maximum(mm(h, prepped["w1"]) + prepped["b1"], 0.0)
        return mm(h, prepped["w2"]) + prepped["b2"]

    ex, ey = encode(x), encode(y)
    dt_pad = ex.shape[1]
    idx = jnp.arange(dt_pad)
    g = jnp.where(idx < D, 1.0, jnp.where(idx < D + T, -1.0, 0.0))
    d = ex - ey
    dist = jnp.sum(g * d * d, axis=-1, keepdims=True)
    return dist, ex[:, D:D + T], ey[:, D:D + T]


if __name__ == "__main__":
    # Module hyperparameters (small, consistent with the forward pass).
    N, D, T, J_encoder = 16, 4, 2, 2    # J_encoder -> 2 hidden ReLU layers
    H = 100                             # Encoder hidden_dim=100 (fixed in module)
    B = 16                              # small batch

    key = jax.random.PRNGKey(0)
    kp, kx, ky = jax.random.split(key, 3)
    params = init_params(kp, N, H, D + T)
    prepped = prepare_params(params)
    x = jax.random.normal(kx, (B, N), jnp.float32)
    y = jax.random.normal(ky, (B, N), jnp.float32)

    dist, px, py = minkowski_forward(x, y, prepped, D=D, T=T)
    jax.block_until_ready((dist, px, py))

    assert dist.shape == (B, 1) and px.shape == (B, T) and py.shape == (B, T)

    # Tight check against a reference using the same bf16/f32 matmul policy.
    m_dist, m_px, m_py = reference_forward_mixed(x, y, prepped, D=D, T=T)
    assert jnp.allclose(dist, m_dist, atol=2e-3, rtol=2e-3)
    assert jnp.allclose(px, m_px, atol=2e-3, rtol=2e-3)
    assert jnp.allclose(py, m_py, atol=2e-3, rtol=2e-3)

    # Looser check against the pure-f32 module semantics (bf16 matmul noise).
    r_dist, r_px, r_py = reference_forward_f32(x, y, params, D=D, T=T)
    assert jnp.allclose(dist, r_dist, atol=5e-2, rtol=5e-2)
    assert jnp.allclose(px, r_px, atol=5e-2, rtol=5e-2)
    assert jnp.allclose(py, r_py, atol=5e-2, rtol=5e-2)

    print("KERNEL_OK")
</pallas_src>

<mosaic_0001>
module attributes {stable_mosaic.version = 11 : i64} {
  func.func @minkowski_kernel(%arg0: i32, %arg1: memref<2x128x16xbf16, #tpu.memory_space<vmem>>, %arg2: memref<16x128xbf16, #tpu.memory_space<vmem>>, %arg3: memref<1x128xf32, #tpu.memory_space<vmem>>, %arg4: memref<128x128xbf16, #tpu.memory_space<vmem>>, %arg5: memref<1x128xf32, #tpu.memory_space<vmem>>, %arg6: memref<128x128xbf16, #tpu.memory_space<vmem>>, %arg7: memref<1x128xf32, #tpu.memory_space<vmem>>, %arg8: memref<8x128xf32, #tpu.memory_space<vmem>>) attributes {dimension_semantics = [#tpu.dimension_semantics<parallel>], iteration_bounds = array<i64: 1>, scalar_prefetch = 0 : i64, scratch_operands = 0 : i64, tpu.core_type = #tpu.core_type<tc>, window_params = [{transform_indices = @transform_0, window_bounds = array<i64: 2, 128, 16>}, {pipeline_mode = #tpu.pipeline_mode<synchronous>, transform_indices = @transform_1, window_bounds = array<i64: 16, 128>}, {pipeline_mode = #tpu.pipeline_mode<synchronous>, transform_indices = @transform_2, window_bounds = array<i64: 1, 128>}, {pipeline_mode = #tpu.pipeline_mode<synchronous>, transform_indices = @transform_3, window_bounds = array<i64: 128, 128>}, {pipeline_mode = #tpu.pipeline_mode<synchronous>, transform_indices = @transform_4, window_bounds = array<i64: 1, 128>}, {pipeline_mode = #tpu.pipeline_mode<synchronous>, transform_indices = @transform_5, window_bounds = array<i64: 128, 128>}, {pipeline_mode = #tpu.pipeline_mode<synchronous>, transform_indices = @transform_6, window_bounds = array<i64: 1, 128>}, {transform_indices = @transform_7, window_bounds = array<i64: 8, 128>}]} {
    %c0 = arith.constant 0 : index
    %c0_0 = arith.constant 0 : index
    %c0_1 = arith.constant 0 : index
    %0 = vector.load %arg1[%c0, %c0_0, %c0_1] : memref<2x128x16xbf16, #tpu.memory_space<vmem>>, vector<2x128x16xbf16>
    %1 = vector.shape_cast %0 : vector<2x128x16xbf16> to vector<256x16xbf16>
    %c0_2 = arith.constant 0 : index
    %c0_3 = arith.constant 0 : index
    %2 = vector.load %arg2[%c0_2, %c0_3] : memref<16x128xbf16, #tpu.memory_space<vmem>>, vector<16x128xbf16>
    %cst = arith.constant dense<0.000000e+00> : vector<256x128xf32>
    %3 = tpu.matmul %1, %2, %cst {dimension_numbers = #tpu.dot_dimension_numbers<[1], [0], [0], [1], [0, 0, 1, 1], [], []>} : vector<256x16xbf16>, vector<16x128xbf16>, vector<256x128xf32> -> vector<256x128xf32>
    %c0_4 = arith.constant 0 : index
    %c0_5 = arith.constant 0 : index
    %4 = vector.load %arg3[%c0_4, %c0_5] : memref<1x128xf32, #tpu.memory_space<vmem>>, vector<1x128xf32>
    %5 = vector.broadcast %4 : vector<1x128xf32> to vector<256x128xf32>
    %6 = arith.addf %3, %5 : vector<256x128xf32>
    %cst_6 = arith.constant 0.000000e+00 : f32
    %7 = vector.broadcast %cst_6 : f32 to vector<256x128xf32>
    %8 = arith.maximumf %6, %7 : vector<256x128xf32>
    %9 = arith.truncf %8 : vector<256x128xf32> to vector<256x128xbf16>
    %c0_7 = arith.constant 0 : index
    %c0_8 = arith.constant 0 : index
    %10 = vector.load %arg4[%c0_7, %c0_8] : memref<128x128xbf16, #tpu.memory_space<vmem>>, vector<128x128xbf16>
    %cst_9 = arith.constant dense<0.000000e+00> : vector<256x128xf32>
    %11 = tpu.matmul %9, %10, %cst_9 {dimension_numbers = #tpu.dot_dimension_numbers<[1], [0], [0], [1], [0, 0, 1, 1], [], []>} : vector<256x128xbf16>, vector<128x128xbf16>, vector<256x128xf32> -> vector<256x128xf32>
    %c0_10 = arith.constant 0 : index
    %c0_11 = arith.constant 0 : index
    %12 = vector.load %arg5[%c0_10, %c0_11] : memref<1x128xf32, #tpu.memory_space<vmem>>, vector<1x128xf32>
    %13 = vector.broadcast %12 : vector<1x128xf32> to vector<256x128xf32>
    %14 = arith.addf %11, %13 : vector<256x128xf32>
    %cst_12 = arith.constant 0.000000e+00 : f32
    %15 = vector.broadcast %cst_12 : f32 to vector<256x128xf32>
    %16 = arith.maximumf %14, %15 : vector<256x128xf32>
    %17 = arith.truncf %16 : vector<256x128xf32> to vector<256x128xbf16>
    %c0_13 = arith.constant 0 : index
    %c0_14 = arith.constant 0 : index
    %18 = vector.load %arg6[%c0_13, %c0_14] : memref<128x128xbf16, #tpu.memory_space<vmem>>, vector<128x128xbf16>
    %cst_15 = arith.constant dense<0.000000e+00> : vector<256x128xf32>
    %19 = tpu.matmul %17, %18, %cst_15 {dimension_numbers = #tpu.dot_dimension_numbers<[1], [0], [0], [1], [0, 0, 1, 1], [], []>} : vector<256x128xbf16>, vector<128x128xbf16>, vector<256x128xf32> -> vector<256x128xf32>
    %c0_16 = arith.constant 0 : index
    %c0_17 = arith.constant 0 : index
    %20 = vector.load %arg7[%c0_16, %c0_17] : memref<1x128xf32, #tpu.memory_space<vmem>>, vector<1x128xf32>
    %21 = vector.broadcast %20 : vector<1x128xf32> to vector<256x128xf32>
    %22 = arith.addf %19, %21 : vector<256x128xf32>
    %23 = vector.extract_strided_slice %22 {offsets = [0, 0], sizes = [128, 128], strides = [1, 1]} : vector<256x128xf32> to vector<128x128xf32>
    %24 = vector.extract_strided_slice %22 {offsets = [128, 0], sizes = [128, 128], strides = [1, 1]} : vector<256x128xf32> to vector<128x128xf32>
    %25 = tpu.iota {dimensions = array<i32: 1>} : vector<1x128xi32>
    %c4_i32 = arith.constant 4 : i32
    %26 = vector.broadcast %c4_i32 : i32 to vector<1x128xi32>
    %27 = arith.cmpi slt, %25, %26 : vector<1x128xi32>
    %cst_18 = arith.constant 1.000000e+00 : f32
    %cst_19 = arith.constant -1.000000e+00 : f32
    %28 = vector.broadcast %cst_18 : f32 to vector<1x128xf32>
    %29 = vector.broadcast %cst_19 : f32 to vector<1x128xf32>
    %30 = arith.select %27, %28, %29 : vector<1x128xi1>, vector<1x128xf32>
    %31 = arith.subf %23, %24 : vector<128x128xf32>
    %32 = vector.broadcast %30 : vector<1x128xf32> to vector<128x128xf32>
    %33 = arith.mulf %32, %31 : vector<128x128xf32>
    %34 = arith.mulf %33, %31 : vector<128x128xf32>
    %cst_20 = arith.constant dense<0.000000e+00> : vector<128xf32>
    %35 = vector.multi_reduction <add>, %34, %cst_20 [1] : vector<128x128xf32> to vector<128xf32>
    %36 = vector.shape_cast %35 : vector<128xf32> to vector<128x1xf32>
    %37 = vector.extract_strided_slice %23 {offsets = [0, 4], sizes = [128, 2], strides = [1, 1]} : vector<128x128xf32> to vector<128x2xf32>
    %38 = vector.extract_strided_slice %24 {offsets = [0, 4], sizes = [128, 2], strides = [1, 1]} : vector<128x128xf32> to vector<128x2xf32>
    %cst_21 = arith.constant 0.000000e+00 : f32
    %39 = vector.broadcast %cst_21 : f32 to vector<128x3xf32>
    %40 = tpu.concatenate %36, %37, %38, %39 in 1 : vector<128x1xf32>, vector<128x2xf32>, vector<128x2xf32>, vector<128x3xf32> -> vector<128x8xf32>
    %41 = tpu.transpose %40, [1, 0] : vector<128x8xf32> -> vector<8x128xf32>
    %c0_22 = arith.constant 0 : index
    %c0_23 = arith.constant 0 : index
    %42 = vector.load %arg8[%c0_22, %c0_23] : memref<8x128xf32, #tpu.memory_space<vmem>>, vector<8x128xf32>
    tpu.vector_store %arg8[%c0_22, %c0_23], %41 {strides = array<i32>} : memref<8x128xf32, #tpu.memory_space<vmem>>, vector<8x128xf32>,
    return
  }
  func.func @transform_0(%arg0: i32) -> (i32, i32, i32) {
    %c0_i32 = arith.constant 0 : i32
    %c0_i32_0 = arith.constant 0 : i32
    %c0_i32_1 = arith.constant 0 : i32
    return %c0_i32, %arg0, %c0_i32_0 : i32, i32, i32
  }
  func.func @transform_1(%arg0: i32) -> (i32, i32) {
    %c0_i32 = arith.constant 0 : i32
    %c0_i32_0 = arith.constant 0 : i32
    %c0_i32_1 = arith.constant 0 : i32
    return %c0_i32, %c0_i32_0 : i32, i32
  }
  func.func @transform_2(%arg0: i32) -> (i32, i32) {
    %c0_i32 = arith.constant 0 : i32
    %c0_i32_0 = arith.constant 0 : i32
    %c0_i32_1 = arith.constant 0 : i32
    return %c0_i32, %c0_i32_0 : i32, i32
  }
  func.func @transform_3(%arg0: i32) -> (i32, i32) {
    %c0_i32 = arith.constant 0 : i32
    %c0_i32_0 = arith.constant 0 : i32
    %c0_i32_1 = arith.constant 0 : i32
    return %c0_i32, %c0_i32_0 : i32, i32
  }
  func.func @transform_4(%arg0: i32) -> (i32, i32) {
    %c0_i32 = arith.constant 0 : i32
    %c0_i32_0 = arith.constant 0 : i32
    %c0_i32_1 = arith.constant 0 : i32
    return %c0_i32, %c0_i32_0 : i32, i32
  }
  func.func @transform_5(%arg0: i32) -> (i32, i32) {
    %c0_i32 = arith.constant 0 : i32
    %c0_i32_0 = arith.constant 0 : i32
    %c0_i32_1 = arith.constant 0 : i32
    return %c0_i32, %c0_i32_0 : i32, i32
  }
  func.func @transform_6(%arg0: i32) -> (i32, i32) {
    %c0_i32 = arith.constant 0 : i32
    %c0_i32_0 = arith.constant 0 : i32
    %c0_i32_1 = arith.constant 0 : i32
    return %c0_i32, %c0_i32_0 : i32, i32
  }
  func.func @transform_7(%arg0: i32) -> (i32, i32) {
    %c0_i32 = arith.constant 0 : i32
    %c0_i32_0 = arith.constant 0 : i32
    return %c0_i32, %arg0 : i32, i32
  }
}

</mosaic_0001>

<llo_original>
// kernel: tpu_custom_call.1
$region0: #{tpu_custom_call.1}
  #allocation0 [shape = 'u32[]', space=smem, size = 0x4, offset = 0x4, fixed_abs, tag = 'smem constant byte address 0x4 - core index']
  #allocation1 [shape = 'u32[144,128]{1,0:T(1,128)}', space=vmem, size = 0x12000, scoped, tag = 'internal scratch']
  %s0 = inlined_call_operand.vmem [shape: bf16[2,128,16], index: 0, kind: input, shape index: {}]
  %s1 = inlined_call_operand.vmem [shape: bf16[16,128], index: 1, kind: input, shape index: {}]
  %s2 = inlined_call_operand.vmem [shape: f32[1,128], index: 2, kind: input, shape index: {}]
  %s3 = inlined_call_operand.vmem [shape: bf16[128,128], index: 3, kind: input, shape index: {}]
  %s4 = inlined_call_operand.vmem [shape: f32[1,128], index: 4, kind: input, shape index: {}]
  %s5 = inlined_call_operand.vmem [shape: bf16[128,128], index: 5, kind: input, shape index: {}]
  %s6 = inlined_call_operand.vmem [shape: f32[1,128], index: 6, kind: input, shape index: {}]
  %s7 = inlined_call_operand.hbm [shape: f32[8,128], index: 7, kind: output, shape index: {}]
  %s8 = sld [smem:[#allocation0]]
  $region38: #{tpu_custom_call.1} parent=0
    _
  %s10 = ssub.s32 1, %s8
  %s11 = scalar_select 0, %s10, %s8
  $region1: #{tpu_custom_call.1} parent=0
    #allocation2 [shape = 'u8[4096]{0}', space=vmem, size = 0x1000, scoped, tag = 'output window, operand 0, single buffered']
    #allocation3 [shape = 's32[1]{0}', space=sflag, size = 0x4, scoped, tag = 'scoped memory for tpu_custom_call.1']
    %12 = vsyncpa [#allocation3], 0
    // Predicated region
    $region2: #{tpu_custom_call.1} parent=1 // pred_check
      _
    $region3: #{tpu_custom_call.1} parent=1 // pred_check_branch
      %14 = sbr.rel (0) target = $region5
    $region4: #{tpu_custom_call.1} parent=1 // pred_region
      _
    $region5: #{tpu_custom_call.1} parent=1 // pred_fallthru
      _
    // Predicated region
    $region6: #{tpu_custom_call.1} parent=1 // pred_check
      _
    $region7: #{tpu_custom_call.1} parent=1 // pred_check_branch
      %16 = sbr.rel (0) target = $region9
    $region8: #{tpu_custom_call.1} parent=1 // pred_region
      _
    $region9: #{tpu_custom_call.1} parent=1 // pred_fallthru
      _
    // Predicated region
    $region10: #{tpu_custom_call.1} parent=1 // pred_check
      _
    $region11: #{tpu_custom_call.1} parent=1 // pred_check_branch
      %18 = sbr.rel (0) target = $region13
    $region12: #{tpu_custom_call.1} parent=1 // pred_region
      _
    $region13: #{tpu_custom_call.1} parent=1 // pred_fallthru
      _
    // Predicated region
    $region14: #{tpu_custom_call.1} parent=1 // pred_check
      _
    $region15: #{tpu_custom_call.1} parent=1 // pred_check_branch
      %20 = sbr.rel (0) target = $region17
    $region16: #{tpu_custom_call.1} parent=1 // pred_region
      _
    $region17: #{tpu_custom_call.1} parent=1 // pred_fallthru
      _
    // Predicated region
    $region18: #{tpu_custom_call.1} parent=1 // pred_check
      _
    $region19: #{tpu_custom_call.1} parent=1 // pred_check_branch
      %22 = sbr.rel (0) target = $region21
    $region20: #{tpu_custom_call.1} parent=1 // pred_region
      _
    $region21: #{tpu_custom_call.1} parent=1 // pred_fallthru
      _
    // Predicated region
    $region22: #{tpu_custom_call.1} parent=1 // pred_check
      _
    $region23: #{tpu_custom_call.1} parent=1 // pred_check_branch
      %24 = sbr.rel (0) target = $region25
    $region24: #{tpu_custom_call.1} parent=1 // pred_region
      _
    $region25: #{tpu_custom_call.1} parent=1 // pred_fallthru
      _
    // Predicated region
    $region26: #{tpu_custom_call.1} parent=1 // pred_check
      _
    $region27: #{tpu_custom_call.1} parent=1 // pred_check_branch
      %26 = sbr.rel (0) target = $region29
    $region28: #{tpu_custom_call.1} parent=1 // pred_region
      _
    $region29: #{tpu_custom_call.1} parent=1 // pred_fallthru
      _
    %v28 = vld [vmem:[%s0] sm:$0xf]
    %v29 = vld [vmem:[%s0 + $0x4] sm:$0xf]
    %v30 = vld [vmem:[%s0 + $0x8] sm:$0xf]
    %v31 = vld [vmem:[%s0 + $0xc] sm:$0xf]
    %v32 = vld [vmem:[%s0 + $0x10] sm:$0xf]
    %v33 = vld [vmem:[%s0 + $0x14] sm:$0xf]
    %v34 = vld [vmem:[%s0 + $0x18] sm:$0xf]
    %v35 = vld [vmem:[%s0 + $0x1c] sm:$0xf]
    %v36 = vld [vmem:[%s0 + $0x20] sm:$0xf]
    %v37 = vld [vmem:[%s0 + $0x24] sm:$0xf]
    %v38 = vld [vmem:[%s0 + $0x28] sm:$0xf]
    %v39 = vld [vmem:[%s0 + $0x2c] sm:$0xf]
    %v40 = vld [vmem:[%s0 + $0x30] sm:$0xf]
    %v41 = vld [vmem:[%s0 + $0x34] sm:$0xf]
    %v42 = vld [vmem:[%s0 + $0x38] sm:$0xf]
    %v43 = vld [vmem:[%s0 + $0x3c] sm:$0xf]
    %v44 = vld [vmem:[%s0 + $0x40] sm:$0xf]
    %v45 = vld [vmem:[%s0 + $0x44] sm:$0xf]
    %v46 = vld [vmem:[%s0 + $0x48] sm:$0xf]
    %v47 = vld [vmem:[%s0 + $0x4c] sm:$0xf]
    %v48 = vld [vmem:[%s0 + $0x50] sm:$0xf]
    %v49 = vld [vmem:[%s0 + $0x54] sm:$0xf]
    %v50 = vld [vmem:[%s0 + $0x58] sm:$0xf]
    %v51 = vld [vmem:[%s0 + $0x5c] sm:$0xf]
    %v52 = vld [vmem:[%s0 + $0x60] sm:$0xf]
    %v53 = vld [vmem:[%s0 + $0x64] sm:$0xf]
    %v54 = vld [vmem:[%s0 + $0x68] sm:$0xf]
    %v55 = vld [vmem:[%s0 + $0x6c] sm:$0xf]
    %v56 = vld [vmem:[%s0 + $0x70] sm:$0xf]
    %v57 = vld [vmem:[%s0 + $0x74] sm:$0xf]
    %v58 = vld [vmem:[%s0 + $0x78] sm:$0xf]
    %v59 = vld [vmem:[%s0 + $0x7c] sm:$0xf]
    %v60 = vld [vmem:[%s1] sm:$0xf]
    %v61 = vld [vmem:[%s1 + $0x4] sm:$0xf]
    %v62 = vld [vmem:[%s2] sm:$0x1]
    %v64 = vlaneseq
    %v65 = vshrl.u32 %v64, 7
    %v66 = vsub.s32 0, %v65
    %v67 = vrot.slane %v62, %v66
    %v101 = vunpack.c.l.b16 %v28
    %v102 = vunpack.c.l.b16 %v29
    %v103 = vunpack.c.l.b16 %v30
    %v104 = vunpack.c.l.b16 %v31
    %v105 = vunpack.c.l.b16 %v32
    %v106 = vunpack.c.l.b16 %v33
    %v107 = vunpack.c.l.b16 %v34
    %v108 = vunpack.c.l.b16 %v35
    %v109 = vunpack.c.l.b16 %v36
    %v110 = vunpack.c.l.b16 %v37
    %v111 = vunpack.c.l.b16 %v38
    %v112 = vunpack.c.l.b16 %v39
    %v113 = vunpack.c.l.b16 %v40
    %v114 = vunpack.c.l.b16 %v41
    %v115 = vunpack.c.l.b16 %v42
    %v116 = vunpack.c.l.b16 %v43
    %v117 = vunpack.c.l.b16 %v44
    %v118 = vunpack.c.l.b16 %v45
    %v119 = vunpack.c.l.b16 %v46
    %v120 = vunpack.c.l.b16 %v47
    %v121 = vunpack.c.l.b16 %v48
    %v122 = vunpack.c.l.b16 %v49
    %v123 = vunpack.c.l.b16 %v50
    %v124 = vunpack.c.l.b16 %v51
    %v125 = vunpack.c.l.b16 %v52
    %v126 = vunpack.c.l.b16 %v53
    %v127 = vunpack.c.l.b16 %v54
    %v128 = vunpack.c.l.b16 %v55
    %v129 = vunpack.c.l.b16 %v56
    %v130 = vunpack.c.l.b16 %v57
    %v131 = vunpack.c.l.b16 %v58
    %v132 = vunpack.c.l.b16 %v59
    %v133 = vpack.c.b16 %v102, %v101
    %v134 = vpack.c.b16 %v104, %v103
    %v135 = vpack.c.b16 %v106, %v105
    %v136 = vpack.c.b16 %v108, %v107
    %v137 = vpack.c.b16 %v110, %v109
    %v138 = vpack.c.b16 %v112, %v111
    %v139 = vpack.c.b16 %v114, %v113
    %v140 = vpack.c.b16 %v116, %v115
    %v141 = vpack.c.b16 %v118, %v117
    %v142 = vpack.c.b16 %v120, %v119
    %v143 = vpack.c.b16 %v122, %v121
    %v144 = vpack.c.b16 %v124, %v123
    %v145 = vpack.c.b16 %v126, %v125
    %v146 = vpack.c.b16 %v128, %v127
    %v147 = vpack.c.b16 %v130, %v129
    %v148 = vpack.c.b16 %v132, %v131
    %v151 = vunpack.c.l.b16 %v60
    %v152 = vunpack.c.l.b16 %v61
    %v153 = vpack.c.b16 %v152, %v151
    %vm155 = vcmask 130048
    %v157 = vsel %vm155, %v133, 0
    %v160 = vsel %vm155, %v134, 0
    %v163 = vsel %vm155, %v135, 0
    %v166 = vsel %vm155, %v136, 0
    %v169 = vsel %vm155, %v137, 0
    %v172 = vsel %vm155, %v138, 0
    %v175 = vsel %vm155, %v139, 0
    %v178 = vsel %vm155, %v140, 0
    %v181 = vsel %vm155, %v141, 0
    %v184 = vsel %vm155, %v142, 0
    %v187 = vsel %vm155, %v143, 0
    %v190 = vsel %vm155, %v144, 0
    %v193 = vsel %vm155, %v145, 0
    %v196 = vsel %vm155, %v146, 0
    %v199 = vsel %vm155, %v147, 0
    %v202 = vsel %vm155, %v148, 0
    %204 = vmatprep.subr.bf16.mxu0 0
    %205 = vmatpush1.bf16.msra.mxu0 %v153
    %206 = vmatprep.subr.bf16.mxu0 0
    %207 = vmatpush1.bf16.msra.mxu0 0
    %208 = vmatprep.subr.bf16.mxu0 0
    %209 = vmatpush1.bf16.msra.mxu0 0
    %210 = vmatprep.subr.bf16.mxu0 0
    %211 = vmatpush1.bf16.msra.mxu0 0
    %212 = vmatprep.subr.bf16.mxu0 0
    %213 = vmatpush1.bf16.msra.mxu0 0
    %214 = vmatprep.subr.bf16.mxu0 0
    %215 = vmatpush1.bf16.msra.mxu0 0
    %216 = vmatprep.subr.bf16.mxu0 0
    %217 = vmatpush1.bf16.msra.mxu0 0
    %218 = vmatprep.subr.bf16.mxu0 0
    %219 = vmatpush1.bf16.msra.mxu0 0
    %220 = vmatprep.subr.bf16.mxu0 0
    %221 = vmatpush1.bf16.msra.mxu0 0
    %222 = vmatprep.subr.bf16.mxu0 0
    %223 = vmatpush1.bf16.msra.mxu0 0
    %224 = vmatprep.subr.bf16.mxu0 0
    %225 = vmatpush1.bf16.msra.mxu0 0
    %226 = vmatprep.subr.bf16.mxu0 0
    %227 = vmatpush1.bf16.msra.mxu0 0
    %228 = vmatprep.subr.bf16.mxu0 0
    %229 = vmatpush1.bf16.msra.mxu0 0
    %230 = vmatprep.subr.bf16.mxu0 0
    %231 = vmatpush1.bf16.msra.mxu0 0
    %232 = vmatprep.subr.bf16.mxu0 0
    %233 = vmatpush1.bf16.msra.mxu0 0
    %234 = vmatprep.subr.bf16.mxu0 0
    %235 = vmatpush1.bf16.msra.mxu0 0
    %236 = vmatprep.mubr.bf16.mxu0 0
    %237 = vmatmul.mubr.bf16.gmra.mrb[0].mxu0 %v157
    %v238 = vpop.f32.mrb[0].mxu0
    %v239 = vadd.f32 %v67, %v238
    %v240 = vpop.f32.mrb[0].mxu0
    %v241 = vpop.f32.mrb[0].mxu0
    %v242 = vadd.f32 %v67, %v241
    %v243 = vpop.f32.mrb[0].mxu0
    %244 = vmatprep.mubr.bf16.mxu0 0
    %245 = vmatmul.mubr.bf16.gmra.mrb[0].mxu0 %v160
    %v246 = vpop.f32.mrb[0].mxu0
    %v247 = vadd.f32 %v67, %v246
    %v248 = vpop.f32.mrb[0].mxu0
    %v249 = vpop.f32.mrb[0].mxu0
    %v250 = vadd.f32 %v67, %v249
    %v251 = vpop.f32.mrb[0].mxu0
    %252 = vmatprep.mubr.bf16.mxu0 0
    %253 = vmatmul.mubr.bf16.gmra.mrb[0].mxu0 %v163
    %v254 = vpop.f32.mrb[0].mxu0
    %v255 = vadd.f32 %v67, %v254
    %v256 = vpop.f32.mrb[0].mxu0
    %v257 = vpop.f32.mrb[0].mxu0
    %v258 = vadd.f32 %v67, %v257
    %v259 = vpop.f32.mrb[0].mxu0
    %260 = vmatprep.mubr.bf16.mxu0 0
    %261 = vmatmul.mubr.bf16.gmra.mrb[0].mxu0 %v166
    %v262 = vpop.f32.mrb[0].mxu0
    %v263 = vadd.f32 %v67, %v262
    %v264 = vpop.f32.mrb[0].mxu0
    %v265 = vpop.f32.mrb[0].mxu0
    %v266 = vadd.f32 %v67, %v265
    %v267 = vpop.f32.mrb[0].mxu0
    %268 = vmatprep.mubr.bf16.mxu0 0
    %269 = vmatmul.mubr.bf16.gmra.mrb[0].mxu0 %v169
    %v270 = vpop.f32.mrb[0].mxu0
    %v271 = vadd.f32 %v67, %v270
    %v272 = vpop.f32.mrb[0].mxu0
    %v273 = vpop.f32.mrb[0].mxu0
    %v274 = vadd.f32 %v67, %v273
    %v275 = vpop.f32.mrb[0].mxu0
    %276 = vmatprep.mubr.bf16.mxu0 0
    %277 = vmatmul.mubr.bf16.gmra.mrb[0].mxu0 %v172
    %v278 = vpop.f32.mrb[0].mxu0
    %v279 = vadd.f32 %v67, %v278
    %v280 = vpop.f32.mrb[0].mxu0
    %v281 = vpop.f32.mrb[0].mxu0
    %v282 = vadd.f32 %v67, %v281
    %v283 = vpop.f32.mrb[0].mxu0
    %284 = vmatprep.mubr.bf16.mxu0 0
    %285 = vmatmul.mubr.bf16.gmra.mrb[0].mxu0 %v175
    %v286 = vpop.f32.mrb[0].mxu0
    %v287 = vadd.f32 %v67, %v286
    %v288 = vpop.f32.mrb[0].mxu0
    %v289 = vpop.f32.mrb[0].mxu0
    %v290 = vadd.f32 %v67, %v289
    %v291 = vpop.f32.mrb[0].mxu0
    %292 = vmatprep.mubr.bf16.mxu0 0
    %293 = vmatmul.mubr.bf16.gmra.mrb[0].mxu0 %v178
    %v294 = vpop.f32.mrb[0].mxu0
    %v295 = vadd.f32 %v67, %v294
    %v296 = vpop.f32.mrb[0].mxu0
    %v297 = vpop.f32.mrb[0].mxu0
    %v298 = vadd.f32 %v67, %v297
    %v299 = vpop.f32.mrb[0].mxu0
    %300 = vmatprep.mubr.bf16.mxu0 0
    %301 = vmatmul.mubr.bf16.gmra.mrb[0].mxu0 %v181
    %v302 = vpop.f32.mrb[0].mxu0
    %v303 = vadd.f32 %v67, %v302
    %v304 = vpop.f32.mrb[0].mxu0
    %v305 = vpop.f32.mrb[0].mxu0
    %v306 = vadd.f32 %v67, %v305
    %v307 = vpop.f32.mrb[0].mxu0
    %308 = vmatprep.mubr.bf16.mxu0 0
    %309 = vmatmul.mubr.bf16.gmra.mrb[0].mxu0 %v184
    %v310 = vpop.f32.mrb[0].mxu0
    %v311 = vadd.f32 %v67, %v310
    %v312 = vpop.f32.mrb[0].mxu0
    %v313 = vpop.f32.mrb[0].mxu0
    %v314 = vadd.f32 %v67, %v313
    %v315 = vpop.f32.mrb[0].mxu0
    %316 = vmatprep.mubr.bf16.mxu0 0
    %317 = vmatmul.mubr.bf16.gmra.mrb[0].mxu0 %v187
    %v318 = vpop.f32.mrb[0].mxu0
    %v319 = vadd.f32 %v67, %v318
    %v320 = vpop.f32.mrb[0].mxu0
    %v321 = vpop.f32.mrb[0].mxu0
    %v322 = vadd.f32 %v67, %v321
    %v323 = vpop.f32.mrb[0].mxu0
    %324 = vmatprep.mubr.bf16.mxu0 0
    %325 = vmatmul.mubr.bf16.gmra.mrb[0].mxu0 %v190
    %v326 = vpop.f32.mrb[0].mxu0
    %v327 = vadd.f32 %v67, %v326
    %v328 = vpop.f32.mrb[0].mxu0
    %v329 = vpop.f32.mrb[0].mxu0
    %v330 = vadd.f32 %v67, %v329
    %v331 = vpop.f32.mrb[0].mxu0
    %332 = vmatprep.mubr.bf16.mxu0 0
    %333 = vmatmul.mubr.bf16.gmra.mrb[0].mxu0 %v193
    %v334 = vpop.f32.mrb[0].mxu0
    %v335 = vadd.f32 %v67, %v334
    %v336 = vpop.f32.mrb[0].mxu0
    %v337 = vpop.f32.mrb[0].mxu0
    %v338 = vadd.f32 %v67, %v337
    %v339 = vpop.f32.mrb[0].mxu0
    %340 = vmatprep.mubr.bf16.mxu0 0
    %341 = vmatmul.mubr.bf16.gmra.mrb[0].mxu0 %v196
    %v342 = vpop.f32.mrb[0].mxu0
    %v343 = vadd.f32 %v67, %v342
    %v344 = vpop.f32.mrb[0].mxu0
    %v345 = vpop.f32.mrb[0].mxu0
    %v346 = vadd.f32 %v67, %v345
    %v347 = vpop.f32.mrb[0].mxu0
    %348 = vmatprep.mubr.bf16.mxu0 0
    %349 = vmatmul.mubr.bf16.gmra.mrb[0].mxu0 %v199
    %v350 = vpop.f32.mrb[0].mxu0
    %v351 = vadd.f32 %v67, %v350
    %v352 = vpop.f32.mrb[0].mxu0
    %v353 = vpop.f32.mrb[0].mxu0
    %v354 = vadd.f32 %v67, %v353
    %v355 = vpop.f32.mrb[0].mxu0
    %356 = vmatprep.mubr.bf16.mxu0 0
    %357 = vmatmul.mubr.bf16.gmra.mrb[0].mxu0 %v202
    %v358 = vpop.f32.mrb[0].mxu0
    %v359 = vadd.f32 %v67, %v358
    %v360 = vpop.f32.mrb[0].mxu0
    %v361 = vpop.f32.mrb[0].mxu0
    %v362 = vadd.f32 %v67, %v361
    %v363 = vpop.f32.mrb[0].mxu0
    %364 = vdwg.mxu0
    %v365 = vmax.f32 %v239, 0.0
    %v366 = vmax.f32 %v242, 0.0
    %v367 = vmax.f32 %v247, 0.0
    %v368 = vmax.f32 %v250, 0.0
    %v369 = vmax.f32 %v255, 0.0
    %v370 = vmax.f32 %v258, 0.0
    %v371 = vmax.f32 %v263, 0.0
    %v372 = vmax.f32 %v266, 0.0
    %v373 = vmax.f32 %v271, 0.0
    %v374 = vmax.f32 %v274, 0.0
    %v375 = vmax.f32 %v279, 0.0
    %v376 = vmax.f32 %v282, 0.0
    %v377 = vmax.f32 %v287, 0.0
    %v378 = vmax.f32 %v290, 0.0
    %v379 = vmax.f32 %v295, 0.0
    %v380 = vmax.f32 %v298, 0.0
    %v381 = vmax.f32 %v303, 0.0
    %v382 = vmax.f32 %v306, 0.0
    %v383 = vmax.f32 %v311, 0.0
    %v384 = vmax.f32 %v314, 0.0
    %v385 = vmax.f32 %v319, 0.0
    %v386 = vmax.f32 %v322, 0.0
    %v387 = vmax.f32 %v327, 0.0
    %v388 = vmax.f32 %v330, 0.0
    %v389 = vmax.f32 %v335, 0.0
    %v390 = vmax.f32 %v338, 0.0
    %v391 = vmax.f32 %v343, 0.0
    %v392 = vmax.f32 %v346, 0.0
    %v393 = vmax.f32 %v351, 0.0
    %v394 = vmax.f32 %v354, 0.0
    %v395 = vmax.f32 %v359, 0.0
    %v396 = vmax.f32 %v362, 0.0
    %v397 = vpack.c.bf16 %v366, %v365
    %v398 = vpack.c.bf16 %v368, %v367
    %v399 = vpack.c.bf16 %v370, %v369
    %v400 = vpack.c.bf16 %v372, %v371
    %v401 = vpack.c.bf16 %v374, %v373
    %v402 = vpack.c.bf16 %v376, %v375
    %v403 = vpack.c.bf16 %v378, %v377
    %v404 = vpack.c.bf16 %v380, %v379
    %v405 = vpack.c.bf16 %v382, %v381
    %v406 = vpack.c.bf16 %v384, %v383
    %v407 = vpack.c.bf16 %v386, %v385
    %v408 = vpack.c.bf16 %v388, %v387
    %v409 = vpack.c.bf16 %v390, %v389
    %v410 = vpack.c.bf16 %v392, %v391
    %v411 = vpack.c.bf16 %v394, %v393
    %v412 = vpack.c.bf16 %v396, %v395
    %v413 = vld [vmem:[%s3] sm:$0xf]
    %v414 = vld [vmem:[%s3 + $0x4] sm:$0xf]
    %v415 = vld [vmem:[%s3 + $0x8] sm:$0xf]
    %v416 = vld [vmem:[%s3 + $0xc] sm:$0xf]
    %v417 = vld [vmem:[%s3 + $0x10] sm:$0xf]
    %v418 = vld [vmem:[%s3 + $0x14] sm:$0xf]
    %v419 = vld [vmem:[%s3 + $0x18] sm:$0xf]
    %v420 = vld [vmem:[%s3 + $0x1c] sm:$0xf]
    %v421 = vld [vmem:[%s3 + $0x20] sm:$0xf]
    %v422 = vld [vmem:[%s3 + $0x24] sm:$0xf]
    %v423 = vld [vmem:[%s3 + $0x28] sm:$0xf]
    %v424 = vld [vmem:[%s3 + $0x2c] sm:$0xf]
    %v425 = vld [vmem:[%s3 + $0x30] sm:$0xf]
    %v426 = vld [vmem:[%s3 + $0x34] sm:$0xf]
    %v427 = vld [vmem:[%s3 + $0x38] sm:$0xf]
    %v428 = vld [vmem:[%s3 + $0x3c] sm:$0xf]
    %v429 = vld [vmem:[%s4] sm:$0x1]
    %v431 = vlaneseq
    %v432 = vshrl.u32 %v431, 7
    %v433 = vsub.s32 0, %v432
    %v434 = vrot.slane %v429, %v433
    %v452 = vunpack.c.l.b16 %v413
    %v453 = vunpack.c.l.b16 %v414
    %v454 = vunpack.c.l.b16 %v415
    %v455 = vunpack.c.l.b16 %v416
    %v456 = vunpack.c.l.b16 %v417
    %v457 = vunpack.c.l.b16 %v418
    %v458 = vunpack.c.l.b16 %v419
    %v459 = vunpack.c.l.b16 %v420
    %v460 = vunpack.c.l.b16 %v421
    %v461 = vunpack.c.l.b16 %v422
    %v462 = vunpack.c.l.b16 %v423
    %v463 = vunpack.c.l.b16 %v424
    %v464 = vunpack.c.l.b16 %v425
    %v465 = vunpack.c.l.b16 %v426
    %v466 = vunpack.c.l.b16 %v427
    %v467 = vunpack.c.l.b16 %v428
    %v468 = vpack.c.b16 %v453, %v452
    %v469 = vpack.c.b16 %v455, %v454
    %v470 = vpack.c.b16 %v457, %v456
    %v471 = vpack.c.b16 %v459, %v458
    %v472 = vpack.c.b16 %v461, %v460
    %v473 = vpack.c.b16 %v463, %v462
    %v474 = vpack.c.b16 %v465, %v464
    %v475 = vpack.c.b16 %v467, %v466
    %484 = vmatprep.subr.bf16.mxu0 0
    %485 = vmatpush1.bf16.msra.mxu0 %v468
    %486 = vmatprep.subr.bf16.mxu0 0
    %487 = vmatpush1.bf16.msra.mxu0 %v469
    %488 = vmatprep.subr.bf16.mxu0 0
    %489 = vmatpush1.bf16.msra.mxu0 %v470
    %490 = vmatprep.subr.bf16.mxu0 0
    %491 = vmatpush1.bf16.msra.mxu0 %v471
    %492 = vmatprep.subr.bf16.mxu0 0
    %493 = vmatpush1.bf16.msra.mxu0 %v472
    %494 = vmatprep.subr.bf16.mxu0 0
    %495 = vmatpush1.bf16.msra.mxu0 %v473
    %496 = vmatprep.subr.bf16.mxu0 0
    %497 = vmatpush1.bf16.msra.mxu0 %v474
    %498 = vmatprep.subr.bf16.mxu0 0
    %499 = vmatpush1.bf16.msra.mxu0 %v475
    %500 = vmatprep.subr.bf16.mxu0 0
    %501 = vmatpush1.bf16.msra.mxu0 0
    %502 = vmatprep.subr.bf16.mxu0 0
    %503 = vmatpush1.bf16.msra.mxu0 0
    %504 = vmatprep.subr.bf16.mxu0 0
    %505 = vmatpush1.bf16.msra.mxu0 0
    %506 = vmatprep.subr.bf16.mxu0 0
    %507 = vmatpush1.bf16.msra.mxu0 0
    %508 = vmatprep.subr.bf16.mxu0 0
    %509 = vmatpush1.bf16.msra.mxu0 0
    %510 = vmatprep.subr.bf16.mxu0 0
    %511 = vmatpush1.bf16.msra.mxu0 0
    %512 = vmatprep.subr.bf16.mxu0 0
    %513 = vmatpush1.bf16.msra.mxu0 0
    %514 = vmatprep.subr.bf16.mxu0 0
    %515 = vmatpush1.bf16.msra.mxu0 0
    %516 = vmatprep.mubr.bf16.mxu0 0
    %517 = vmatmul.mubr.bf16.gmra.mrb[0].mxu0 %v397
    %v518 = vpop.f32.mrb[0].mxu0
    %v519 = vadd.f32 %v434, %v518
    %v520 = vpop.f32.mrb[0].mxu0
    %v521 = vpop.f32.mrb[0].mxu0
    %v522 = vadd.f32 %v434, %v521
    %v523 = vpop.f32.mrb[0].mxu0
    %524 = vmatprep.mubr.bf16.mxu0 0
    %525 = vmatmul.mubr.bf16.gmra.mrb[0].mxu0 %v398
    %v526 = vpop.f32.mrb[0].mxu0
    %v527 = vadd.f32 %v434, %v526
    %v528 = vpop.f32.mrb[0].mxu0
    %v529 = vpop.f32.mrb[0].mxu0
    %v530 = vadd.f32 %v434, %v529
    %v531 = vpop.f32.mrb[0].mxu0
    %532 = vmatprep.mubr.bf16.mxu0 0
    %533 = vmatmul.mubr.bf16.gmra.mrb[0].mxu0 %v399
    %v534 = vpop.f32.mrb[0].mxu0
    %v535 = vadd.f32 %v434, %v534
    %v536 = vpop.f32.mrb[0].mxu0
    %v537 = vpop.f32.mrb[0].mxu0
    %v538 = vadd.f32 %v434, %v537
    %v539 = vpop.f32.mrb[0].mxu0
    %540 = vmatprep.mubr.bf16.mxu0 0
    %541 = vmatmul.mubr.bf16.gmra.mrb[0].mxu0 %v400
    %v542 = vpop.f32.mrb[0].mxu0
    %v543 = vadd.f32 %v434, %v542
    %v544 = vpop.f32.mrb[0].mxu0
    %v545 = vpop.f32.mrb[0].mxu0
    %v546 = vadd.f32 %v434, %v545
    %v547 = vpop.f32.mrb[0].mxu0
    %548 = vmatprep.mubr.bf16.mxu0 0
    %549 = vmatmul.mubr.bf16.gmra.mrb[0].mxu0 %v401
    %v550 = vpop.f32.mrb[0].mxu0
    %v551 = vadd.f32 %v434, %v550
    %v552 = vpop.f32.mrb[0].mxu0
    %v553 = vpop.f32.mrb[0].mxu0
    %v554 = vadd.f32 %v434, %v553
    %v555 = vpop.f32.mrb[0].mxu0
    %556 = vmatprep.mubr.bf16.mxu0 0
    %557 = vmatmul.mubr.bf16.gmra.mrb[0].mxu0 %v402
    %v558 = vpop.f32.mrb[0].mxu0
    %v559 = vadd.f32 %v434, %v558
    %v560 = vpop.f32.mrb[0].mxu0
    %v561 = vpop.f32.mrb[0].mxu0
    %v562 = vadd.f32 %v434, %v561
    %v563 = vpop.f32.mrb[0].mxu0
    %564 = vmatprep.mubr.bf16.mxu0 0
    %565 = vmatmul.mubr.bf16.gmra.mrb[0].mxu0 %v403
    %v566 = vpop.f32.mrb[0].mxu0
    %v567 = vadd.f32 %v434, %v566
    %v568 = vpop.f32.mrb[0].mxu0
    %v569 = vpop.f32.mrb[0].mxu0
    %v570 = vadd.f32 %v434, %v569
    %v571 = vpop.f32.mrb[0].mxu0
    %572 = vmatprep.mubr.bf16.mxu0 0
    %573 = vmatmul.mubr.bf16.gmra.mrb[0].mxu0 %v404
    %v574 = vpop.f32.mrb[0].mxu0
    %v575 = vadd.f32 %v434, %v574
    %v576 = vpop.f32.mrb[0].mxu0
    %v577 = vpop.f32.mrb[0].mxu0
    %v578 = vadd.f32 %v434, %v577
    %v579 = vpop.f32.mrb[0].mxu0
    %580 = vmatprep.mubr.bf16.mxu0 0
    %581 = vmatmul.mubr.bf16.gmra.mrb[0].mxu0 %v405
    %v582 = vpop.f32.mrb[0].mxu0
    %v583 = vadd.f32 %v434, %v582
    %v584 = vpop.f32.mrb[0].mxu0
    %v585 = vpop.f32.mrb[0].mxu0
    %v586 = vadd.f32 %v434, %v585
    %v587 = vpop.f32.mrb[0].mxu0
    %588 = vmatprep.mubr.bf16.mxu0 0
    %589 = vmatmul.mubr.bf16.gmra.mrb[0].mxu0 %v406
    %v590 = vpop.f32.mrb[0].mxu0
    %v591 = vadd.f32 %v434, %v590
    %v592 = vpop.f32.mrb[0].mxu0
    %v593 = vpop.f32.mrb[0].mxu0
    %v594 = vadd.f32 %v434, %v593
    %v595 = vpop.f32.mrb[0].mxu0
    %596 = vmatprep.mubr.bf16.mxu0 0
    %597 = vmatmul.mubr.bf16.gmra.mrb[0].mxu0 %v407
    %v598 = vpop.f32.mrb[0].mxu0
    %v599 = vadd.f32 %v434, %v598
    %v600 = vpop.f32.mrb[0].mxu0
    %v601 = vpop.f32.mrb[0].mxu0
    %v602 = vadd.f32 %v434, %v601
    %v603 = vpop.f32.mrb[0].mxu0
    %604 = vmatprep.mubr.bf16.mxu0 0
    %605 = vmatmul.mubr.bf16.gmra.mrb[0].mxu0 %v408
    %v606 = vpop.f32.mrb[0].mxu0
    %v607 = vadd.f32 %v434, %v606
    %v608 = vpop.f32.mrb[0].mxu0
    %v609 = vpop.f32.mrb[0].mxu0
    %v610 = vadd.f32 %v434, %v609
    %v611 = vpop.f32.mrb[0].mxu0
    %612 = vmatprep.mubr.bf16.mxu0 0
    %613 = vmatmul.mubr.bf16.gmra.mrb[0].mxu0 %v409
    %v614 = vpop.f32.mrb[0].mxu0
    %v615 = vadd.f32 %v434, %v614
    %v616 = vpop.f32.mrb[0].mxu0
    %v617 = vpop.f32.mrb[0].mxu0
    %v618 = vadd.f32 %v434, %v617
    %v619 = vpop.f32.mrb[0].mxu0
    %620 = vmatprep.mubr.bf16.mxu0 0
    %621 = vmatmul.mubr.bf16.gmra.mrb[0].mxu0 %v410
    %v622 = vpop.f32.mrb[0].mxu0
    %v623 = vadd.f32 %v434, %v622
    %v624 = vpop.f32.mrb[0].mxu0
    %v625 = vpop.f32.mrb[0].mxu0
    %v626 = vadd.f32 %v434, %v625
    %v627 = vpop.f32.mrb[0].mxu0
    %628 = vmatprep.mubr.bf16.mxu0 0
    %629 = vmatmul.mubr.bf16.gmra.mrb[0].mxu0 %v411
    %v630 = vpop.f32.mrb[0].mxu0
    %v631 = vadd.f32 %v434, %v630
    %v632 = vpop.f32.mrb[0].mxu0
    %v633 = vpop.f32.mrb[0].mxu0
    %v634 = vadd.f32 %v434, %v633
    %v635 = vpop.f32.mrb[0].mxu0
    %636 = vmatprep.mubr.bf16.mxu0 0
    %637 = vmatmul.mubr.bf16.gmra.mrb[0].mxu0 %v412
    %v638 = vpop.f32.mrb[0].mxu0
    %v639 = vadd.f32 %v434, %v638
    %v640 = vpop.f32.mrb[0].mxu0
    %v641 = vpop.f32.mrb[0].mxu0
    %v642 = vadd.f32 %v434, %v641
    %v643 = vpop.f32.mrb[0].mxu0
    %644 = vdwg.mxu0
    %v645 = vmax.f32 %v519, 0.0
    %v646 = vmax.f32 %v522, 0.0
    %v647 = vmax.f32 %v527, 0.0
    %v648 = vmax.f32 %v530, 0.0
    %v649 = vmax.f32 %v535, 0.0
    %v650 = vmax.f32 %v538, 0.0
    %v651 = vmax.f32 %v543, 0.0
    %v652 = vmax.f32 %v546, 0.0
    %v653 = vmax.f32 %v551, 0.0
    %v654 = vmax.f32 %v554, 0.0
    %v655 = vmax.f32 %v559, 0.0
    %v656 = vmax.f32 %v562, 0.0
    %v657 = vmax.f32 %v567, 0.0
    %v658 = vmax.f32 %v570, 0.0
    %v659 = vmax.f32 %v575, 0.0
    %v660 = vmax.f32 %v578, 0.0
    %v661 = vmax.f32 %v583, 0.0
    %v662 = vmax.f32 %v586, 0.0
    %v663 = vmax.f32 %v591, 0.0
    %v664 = vmax.f32 %v594, 0.0
    %v665 = vmax.f32 %v599, 0.0
    %v666 = vmax.f32 %v602, 0.0
    %v667 = vmax.f32 %v607, 0.0
    %v668 = vmax.f32 %v610, 0.0
    %v669 = vmax.f32 %v615, 0.0
    %v670 = vmax.f32 %v618, 0.0
    %v671 = vmax.f32 %v623, 0.0
    %v672 = vmax.f32 %v626, 0.0
    %v673 = vmax.f32 %v631, 0.0
    %v674 = vmax.f32 %v634, 0.0
    %v675 = vmax.f32 %v639, 0.0
    %v676 = vmax.f32 %v642, 0.0
    %v677 = vpack.c.bf16 %v646, %v645
    %v678 = vpack.c.bf16 %v648, %v647
    %v679 = vpack.c.bf16 %v650, %v649
    %v680 = vpack.c.bf16 %v652, %v651
    %v681 = vpack.c.bf16 %v654, %v653
    %v682 = vpack.c.bf16 %v656, %v655
    %v683 = vpack.c.bf16 %v658, %v657
    %v684 = vpack.c.bf16 %v660, %v659
    %v685 = vpack.c.bf16 %v662, %v661
    %v686 = vpack.c.bf16 %v664, %v663
    %v687 = vpack.c.bf16 %v666, %v665
    %v688 = vpack.c.bf16 %v668, %v667
    %v689 = vpack.c.bf16 %v670, %v669
    %v690 = vpack.c.bf16 %v672, %v671
    %v691 = vpack.c.bf16 %v674, %v673
    %v692 = vpack.c.bf16 %v676, %v675
    %v693 = vld [vmem:[%s5] sm:$0xf]
    %v694 = vld [vmem:[%s5 + $0x4] sm:$0xf]
    %v695 = vld [vmem:[%s5 + $0x8] sm:$0xf]
    %v696 = vld [vmem:[%s5 + $0xc] sm:$0xf]
    %v697 = vld [vmem:[%s5 + $0x10] sm:$0xf]
    %v698 = vld [vmem:[%s5 + $0x14] sm:$0xf]
    %v699 = vld [vmem:[%s5 + $0x18] sm:$0xf]
    %v700 = vld [vmem:[%s5 + $0x1c] sm:$0xf]
    %v701 = vld [vmem:[%s5 + $0x20] sm:$0xf]
    %v702 = vld [vmem:[%s5 + $0x24] sm:$0xf]
    %v703 = vld [vmem:[%s5 + $0x28] sm:$0xf]
    %v704 = vld [vmem:[%s5 + $0x2c] sm:$0xf]
    %v705 = vld [vmem:[%s5 + $0x30] sm:$0xf]
    %v706 = vld [vmem:[%s5 + $0x34] sm:$0xf]
    %v707 = vld [vmem:[%s5 + $0x38] sm:$0xf]
    %v708 = vld [vmem:[%s5 + $0x3c] sm:$0xf]
    %v709 = vld [vmem:[%s6] sm:$0x1]
    %v711 = vlaneseq
    %v712 = vshrl.u32 %v711, 7
    %v713 = vsub.s32 0, %v712
    %v714 = vrot.slane %v709, %v713
    %v732 = vunpack.c.l.b16 %v693
    %v733 = vunpack.c.l.b16 %v694
    %v734 = vunpack.c.l.b16 %v695
    %v735 = vunpack.c.l.b16 %v696
    %v736 = vunpack.c.l.b16 %v697
    %v737 = vunpack.c.l.b16 %v698
    %v738 = vunpack.c.l.b16 %v699
    %v739 = vunpack.c.l.b16 %v700
    %v740 = vunpack.c.l.b16 %v701
    %v741 = vunpack.c.l.b16 %v702
    %v742 = vunpack.c.l.b16 %v703
    %v743 = vunpack.c.l.b16 %v704
    %v744 = vunpack.c.l.b16 %v705
    %v745 = vunpack.c.l.b16 %v706
    %v746 = vunpack.c.l.b16 %v707
    %v747 = vunpack.c.l.b16 %v708
    %v748 = vpack.c.b16 %v733, %v732
    %v749 = vpack.c.b16 %v735, %v734
    %v750 = vpack.c.b16 %v737, %v736
    %v751 = vpack.c.b16 %v739, %v738
    %v752 = vpack.c.b16 %v741, %v740
    %v753 = vpack.c.b16 %v743, %v742
    %v754 = vpack.c.b16 %v745, %v744
    %v755 = vpack.c.b16 %v747, %v746
    %764 = vmatprep.subr.bf16.mxu0 0
    %765 = vmatpush1.bf16.msra.mxu0 %v748
    %766 = vmatprep.subr.bf16.mxu0 0
    %767 = vmatpush1.bf16.msra.mxu0 %v749
    %768 = vmatprep.subr.bf16.mxu0 0
    %769 = vmatpush1.bf16.msra.mxu0 %v750
    %770 = vmatprep.subr.bf16.mxu0 0
    %771 = vmatpush1.bf16.msra.mxu0 %v751
    %772 = vmatprep.subr.bf16.mxu0 0
    %773 = vmatpush1.bf16.msra.mxu0 %v752
    %774 = vmatprep.subr.bf16.mxu0 0
    %775 = vmatpush1.bf16.msra.mxu0 %v753
    %776 = vmatprep.subr.bf16.mxu0 0
    %777 = vmatpush1.bf16.msra.mxu0 %v754
    %778 = vmatprep.subr.bf16.mxu0 0
    %779 = vmatpush1.bf16.msra.mxu0 %v755
    %780 = vmatprep.subr.bf16.mxu0 0
    %781 = vmatpush1.bf16.msra.mxu0 0
    %782 = vmatprep.subr.bf16.mxu0 0
    %783 = vmatpush1.bf16.msra.mxu0 0
    %784 = vmatprep.subr.bf16.mxu0 0
    %785 = vmatpush1.bf16.msra.mxu0 0
    %786 = vmatprep.subr.bf16.mxu0 0
    %787 = vmatpush1.bf16.msra.mxu0 0
    %788 = vmatprep.subr.bf16.mxu0 0
    %789 = vmatpush1.bf16.msra.mxu0 0
    %790 = vmatprep.subr.bf16.mxu0 0
    %791 = vmatpush1.bf16.msra.mxu0 0
    %792 = vmatprep.subr.bf16.mxu0 0
    %793 = vmatpush1.bf16.msra.mxu0 0
    %794 = vmatprep.subr.bf16.mxu0 0
    %795 = vmatpush1.bf16.msra.mxu0 0
    %796 = vmatprep.mubr.bf16.mxu0 0
    %797 = vmatmul.mubr.bf16.gmra.mrb[0].mxu0 %v677
    %v798 = vpop.f32.mrb[0].mxu0
    %v799 = vadd.f32 %v714, %v798
    %v800 = vpop.f32.mrb[0].mxu0
    %v801 = vpop.f32.mrb[0].mxu0
    %v802 = vadd.f32 %v714, %v801
    %v803 = vpop.f32.mrb[0].mxu0
    %804 = vmatprep.mubr.bf16.mxu0 0
    %805 = vmatmul.mubr.bf16.gmra.mrb[0].mxu0 %v678
    %v806 = vpop.f32.mrb[0].mxu0
    %v807 = vadd.f32 %v714, %v806
    %v808 = vpop.f32.mrb[0].mxu0
    %v809 = vpop.f32.mrb[0].mxu0
    %v810 = vadd.f32 %v714, %v809
    %v811 = vpop.f32.mrb[0].mxu0
    %812 = vmatprep.mubr.bf16.mxu0 0
    %813 = vmatmul.mubr.bf16.gmra.mrb[0].mxu0 %v679
    %v814 = vpop.f32.mrb[0].mxu0
    %v815 = vadd.f32 %v714, %v814
    %v816 = vpop.f32.mrb[0].mxu0
    %v817 = vpop.f32.mrb[0].mxu0
    %v818 = vadd.f32 %v714, %v817
    %v819 = vpop.f32.mrb[0].mxu0
    %820 = vmatprep.mubr.bf16.mxu0 0
    %821 = vmatmul.mubr.bf16.gmra.mrb[0].mxu0 %v680
    %v822 = vpop.f32.mrb[0].mxu0
    %v823 = vadd.f32 %v714, %v822
    %v824 = vpop.f32.mrb[0].mxu0
    %v825 = vpop.f32.mrb[0].mxu0
    %v826 = vadd.f32 %v714, %v825
    %v827 = vpop.f32.mrb[0].mxu0
    %828 = vmatprep.mubr.bf16.mxu0 0
    %829 = vmatmul.mubr.bf16.gmra.mrb[0].mxu0 %v681
    %v830 = vpop.f32.mrb[0].mxu0
    %v831 = vadd.f32 %v714, %v830
    %v832 = vpop.f32.mrb[0].mxu0
    %v833 = vpop.f32.mrb[0].mxu0
    %v834 = vadd.f32 %v714, %v833
    %v835 = vpop.f32.mrb[0].mxu0
    %836 = vmatprep.mubr.bf16.mxu0 0
    %837 = vmatmul.mubr.bf16.gmra.mrb[0].mxu0 %v682
    %v838 = vpop.f32.mrb[0].mxu0
    %v839 = vadd.f32 %v714, %v838
    %v840 = vpop.f32.mrb[0].mxu0
    %v841 = vpop.f32.mrb[0].mxu0
    %v842 = vadd.f32 %v714, %v841
    %v843 = vpop.f32.mrb[0].mxu0
    %844 = vmatprep.mubr.bf16.mxu0 0
    %845 = vmatmul.mubr.bf16.gmra.mrb[0].mxu0 %v683
    %v846 = vpop.f32.mrb[0].mxu0
    %v847 = vadd.f32 %v714, %v846
    %v848 = vpop.f32.mrb[0].mxu0
    %v849 = vpop.f32.mrb[0].mxu0
    %v850 = vadd.f32 %v714, %v849
    %v851 = vpop.f32.mrb[0].mxu0
    %852 = vmatprep.mubr.bf16.mxu0 0
    %853 = vmatmul.mubr.bf16.gmra.mrb[0].mxu0 %v684
    %v854 = vpop.f32.mrb[0].mxu0
    %v855 = vadd.f32 %v714, %v854
    %v856 = vpop.f32.mrb[0].mxu0
    %v857 = vpop.f32.mrb[0].mxu0
    %v858 = vadd.f32 %v714, %v857
    %v859 = vpop.f32.mrb[0].mxu0
    %860 = vmatprep.mubr.bf16.mxu0 0
    %861 = vmatmul.mubr.bf16.gmra.mrb[0].mxu0 %v685
    %v862 = vpop.f32.mrb[0].mxu0
    %v863 = vadd.f32 %v714, %v862
    %v864 = vpop.f32.mrb[0].mxu0
    %v865 = vpop.f32.mrb[0].mxu0
    %v866 = vadd.f32 %v714, %v865
    %v867 = vpop.f32.mrb[0].mxu0
    %868 = vmatprep.mubr.bf16.mxu0 0
    %869 = vmatmul.mubr.bf16.gmra.mrb[0].mxu0 %v686
    %v870 = vpop.f32.mrb[0].mxu0
    %v871 = vadd.f32 %v714, %v870
    %v872 = vpop.f32.mrb[0].mxu0
    %v873 = vpop.f32.mrb[0].mxu0
    %v874 = vadd.f32 %v714, %v873
    %v875 = vpop.f32.mrb[0].mxu0
    %876 = vmatprep.mubr.bf16.mxu0 0
    %877 = vmatmul.mubr.bf16.gmra.mrb[0].mxu0 %v687
    %v878 = vpop.f32.mrb[0].mxu0
    %v879 = vadd.f32 %v714, %v878
    %v880 = vpop.f32.mrb[0].mxu0
    %v881 = vpop.f32.mrb[0].mxu0
    %v882 = vadd.f32 %v714, %v881
    %v883 = vpop.f32.mrb[0].mxu0
    %884 = vmatprep.mubr.bf16.mxu0 0
    %885 = vmatmul.mubr.bf16.gmra.mrb[0].mxu0 %v688
    %v886 = vpop.f32.mrb[0].mxu0
    %v887 = vadd.f32 %v714, %v886
    %v888 = vpop.f32.mrb[0].mxu0
    %v889 = vpop.f32.mrb[0].mxu0
    %v890 = vadd.f32 %v714, %v889
    %v891 = vpop.f32.mrb[0].mxu0
    %892 = vmatprep.mubr.bf16.mxu0 0
    %893 = vmatmul.mubr.bf16.gmra.mrb[0].mxu0 %v689
    %v894 = vpop.f32.mrb[0].mxu0
    %v895 = vadd.f32 %v714, %v894
    %v896 = vpop.f32.mrb[0].mxu0
    %v897 = vpop.f32.mrb[0].mxu0
    %v898 = vadd.f32 %v714, %v897
    %v899 = vpop.f32.mrb[0].mxu0
    %900 = vmatprep.mubr.bf16.mxu0 0
    %901 = vmatmul.mubr.bf16.gmra.mrb[0].mxu0 %v690
    %v902 = vpop.f32.mrb[0].mxu0
    %v903 = vadd.f32 %v714, %v902
    %v904 = vpop.f32.mrb[0].mxu0
    %v905 = vpop.f32.mrb[0].mxu0
    %v906 = vadd.f32 %v714, %v905
    %v907 = vpop.f32.mrb[0].mxu0
    %908 = vmatprep.mubr.bf16.mxu0 0
    %909 = vmatmul.mubr.bf16.gmra.mrb[0].mxu0 %v691
    %v910 = vpop.f32.mrb[0].mxu0
    %v911 = vadd.f32 %v714, %v910
    %v912 = vpop.f32.mrb[0].mxu0
    %v913 = vpop.f32.mrb[0].mxu0
    %v914 = vadd.f32 %v714, %v913
    %v915 = vpop.f32.mrb[0].mxu0
    %916 = vmatprep.mubr.bf16.mxu0 0
    %917 = vmatmul.mubr.bf16.gmra.mrb[0].mxu0 %v692
    %v918 = vpop.f32.mrb[0].mxu0
    %v919 = vadd.f32 %v714, %v918
    %v920 = vpop.f32.mrb[0].mxu0
    %v921 = vpop.f32.mrb[0].mxu0
    %v922 = vadd.f32 %v714, %v921
    %v923 = vpop.f32.mrb[0].mxu0
    %924 = vdwg.mxu0
    %v925 = vlaneseq
    %v926 = vand.u32 %v925, 127
    %vm927 = vcmp.lt.s32.totalorder %v926, 4
    %v928 = vsel %vm927, 1.0, -1.0
    %v929 = vsub.f32 %v799, %v863
    %v930 = vsub.f32 %v802, %v866
    %v931 = vsub.f32 %v807, %v871
    %v932 = vsub.f32 %v810, %v874
    %v933 = vsub.f32 %v815, %v879
    %v934 = vsub.f32 %v818, %v882
    %v935 = vsub.f32 %v823, %v887
    %v936 = vsub.f32 %v826, %v890
    %v937 = vsub.f32 %v831, %v895
    %v938 = vsub.f32 %v834, %v898
    %v939 = vsub.f32 %v839, %v903
    %v940 = vsub.f32 %v842, %v906
    %v941 = vsub.f32 %v847, %v911
    %v942 = vsub.f32 %v850, %v914
    %v943 = vsub.f32 %v855, %v919
    %v944 = vsub.f32 %v858, %v922
    %v945 = vmul.f32 %v928, %v929
    %v946 = vmul.f32 %v928, %v930
    %v947 = vmul.f32 %v928, %v931
    %v948 = vmul.f32 %v928, %v932
    %v949 = vmul.f32 %v928, %v933
    %v950 = vmul.f32 %v928, %v934
    %v951 = vmul.f32 %v928, %v935
    %v952 = vmul.f32 %v928, %v936
    %v953 = vmul.f32 %v928, %v937
    %v954 = vmul.f32 %v928, %v938
    %v955 = vmul.f32 %v928, %v939
    %v956 = vmul.f32 %v928, %v940
    %v957 = vmul.f32 %v928, %v941
    %v958 = vmul.f32 %v928, %v942
    %v959 = vmul.f32 %v928, %v943
    %v960 = vmul.f32 %v928, %v944
    %v961 = vmul.f32 %v945, %v929
    %v962 = vmul.f32 %v946, %v930
    %v963 = vmul.f32 %v947, %v931
    %v964 = vmul.f32 %v948, %v932
    %v965 = vmul.f32 %v949, %v933
    %v966 = vmul.f32 %v950, %v934
    %v967 = vmul.f32 %v951, %v935
    %v968 = vmul.f32 %v952, %v936
    %v969 = vmul.f32 %v953, %v937
    %v970 = vmul.f32 %v954, %v938
    %v971 = vmul.f32 %v955, %v939
    %v972 = vmul.f32 %v956, %v940
    %v973 = vmul.f32 %v957, %v941
    %v974 = vmul.f32 %v958, %v942
    %v975 = vmul.f32 %v959, %v943
    %v976 = vmul.f32 %v960, %v944
    %977 = vadd.xlane.f32.xlu0 %v961
    %v978 = vpop.xlane.xlu0 %977
    %979 = vadd.xlane.f32.xlu0 %v962
    %v980 = vpop.xlane.xlu0 %979
    %981 = vadd.xlane.f32.xlu0 %v963
    %v982 = vpop.xlane.xlu0 %981
    %983 = vadd.xlane.f32.xlu0 %v964
    %v984 = vpop.xlane.xlu0 %983
    %985 = vadd.xlane.f32.xlu0 %v965
    %v986 = vpop.xlane.xlu0 %985
    %987 = vadd.xlane.f32.xlu0 %v966
    %v988 = vpop.xlane.xlu0 %987
    %989 = vadd.xlane.f32.xlu0 %v967
    %v990 = vpop.xlane.xlu0 %989
    %991 = vadd.xlane.f32.xlu0 %v968
    %v992 = vpop.xlane.xlu0 %991
    %993 = vadd.xlane.f32.xlu0 %v969
    %v994 = vpop.xlane.xlu0 %993
    %995 = vadd.xlane.f32.xlu0 %v970
    %v996 = vpop.xlane.xlu0 %995
    %997 = vadd.xlane.f32.xlu0 %v971
    %v998 = vpop.xlane.xlu0 %997
    %999 = vadd.xlane.f32.xlu0 %v972
    %v1000 = vpop.xlane.xlu0 %999
    %1001 = vadd.xlane.f32.xlu0 %v973
    %v1002 = vpop.xlane.xlu0 %1001
    %1003 = vadd.xlane.f32.xlu0 %v974
    %v1004 = vpop.xlane.xlu0 %1003
    %1005 = vadd.xlane.f32.xlu0 %v975
    %v1006 = vpop.xlane.xlu0 %1005
    %1007 = vadd.xlane.f32.xlu0 %v976
    %v1008 = vpop.xlane.xlu0 %1007
    %1025 = vrot.lane.b32.xlu0 %v799, 125
    %v1026 = vpop.permute.xlu0 %1025
    %1027 = vrot.lane.b32.xlu0 %v802, 125
    %v1028 = vpop.permute.xlu0 %1027
    %1029 = vrot.lane.b32.xlu0 %v807, 125
    %v1030 = vpop.permute.xlu0 %1029
    %1031 = vrot.lane.b32.xlu0 %v810, 125
    %v1032 = vpop.permute.xlu0 %1031
    %1033 = vrot.lane.b32.xlu0 %v815, 125
    %v1034 = vpop.permute.xlu0 %1033
    %1035 = vrot.lane.b32.xlu0 %v818, 125
    %v1036 = vpop.permute.xlu0 %1035
    %1037 = vrot.lane.b32.xlu0 %v823, 125
    %v1038 = vpop.permute.xlu0 %1037
    %1039 = vrot.lane.b32.xlu0 %v826, 125
    %v1040 = vpop.permute.xlu0 %1039
    %1041 = vrot.lane.b32.xlu0 %v831, 125
    %v1042 = vpop.permute.xlu0 %1041
    %1043 = vrot.lane.b32.xlu0 %v834, 125
    %v1044 = vpop.permute.xlu0 %1043
    %1045 = vrot.lane.b32.xlu0 %v839, 125
    %v1046 = vpop.permute.xlu0 %1045
    %1047 = vrot.lane.b32.xlu0 %v842, 125
    %v1048 = vpop.permute.xlu0 %1047
    %1049 = vrot.lane.b32.xlu0 %v847, 125
    %v1050 = vpop.permute.xlu0 %1049
    %1051 = vrot.lane.b32.xlu0 %v850, 125
    %v1052 = vpop.permute.xlu0 %1051
    %1053 = vrot.lane.b32.xlu0 %v855, 125
    %v1054 = vpop.permute.xlu0 %1053
    %1055 = vrot.lane.b32.xlu0 %v858, 125
    %v1056 = vpop.permute.xlu0 %1055
    %1089 = vrot.lane.b32.xlu0 %v863, 127
    %v1090 = vpop.permute.xlu0 %1089
    %1091 = vrot.lane.b32.xlu0 %v866, 127
    %v1092 = vpop.permute.xlu0 %1091
    %1093 = vrot.lane.b32.xlu0 %v871, 127
    %v1094 = vpop.permute.xlu0 %1093
    %1095 = vrot.lane.b32.xlu0 %v874, 127
    %v1096 = vpop.permute.xlu0 %1095
    %1097 = vrot.lane.b32.xlu0 %v879, 127
    %v1098 = vpop.permute.xlu0 %1097
    %1099 = vrot.lane.b32.xlu0 %v882, 127
    %v1100 = vpop.permute.xlu0 %1099
    %1101 = vrot.lane.b32.xlu0 %v887, 127
    %v1102 = vpop.permute.xlu0 %1101
    %1103 = vrot.lane.b32.xlu0 %v890, 127
    %v1104 = vpop.permute.xlu0 %1103
    %1105 = vrot.lane.b32.xlu0 %v895, 127
    %v1106 = vpop.permute.xlu0 %1105
    %1107 = vrot.lane.b32.xlu0 %v898, 127
    %v1108 = vpop.permute.xlu0 %1107
    %1109 = vrot.lane.b32.xlu0 %v903, 127
    %v1110 = vpop.permute.xlu0 %1109
    %1111 = vrot.lane.b32.xlu0 %v906, 127
    %v1112 = vpop.permute.xlu0 %1111
    %1113 = vrot.lane.b32.xlu0 %v911, 127
    %v1114 = vpop.permute.xlu0 %1113
    %1115 = vrot.lane.b32.xlu0 %v914, 127
    %v1116 = vpop.permute.xlu0 %1115
    %1117 = vrot.lane.b32.xlu0 %v919, 127
    %v1118 = vpop.permute.xlu0 %1117
    %1119 = vrot.lane.b32.xlu0 %v922, 127
    %v1120 = vpop.permute.xlu0 %1119
    %vm1137 = vcmask 7168
    %v1138 = vsel %vm1137, %v978, %v1026
    %v1139 = vsel %vm1137, %v980, %v1028
    %v1140 = vsel %vm1137, %v982, %v1030
    %v1141 = vsel %vm1137, %v984, %v1032
    %v1142 = vsel %vm1137, %v986, %v1034
    %v1143 = vsel %vm1137, %v988, %v1036
    %v1144 = vsel %vm1137, %v990, %v1038
    %v1145 = vsel %vm1137, %v992, %v1040
    %v1146 = vsel %vm1137, %v994, %v1042
    %v1147 = vsel %vm1137, %v996, %v1044
    %v1148 = vsel %vm1137, %v998, %v1046
    %v1149 = vsel %vm1137, %v1000, %v1048
    %v1150 = vsel %vm1137, %v1002, %v1050
    %v1151 = vsel %vm1137, %v1004, %v1052
    %v1152 = vsel %vm1137, %v1006, %v1054
    %v1153 = vsel %vm1137, %v1008, %v1056
    %vm1154 = vcmask 23552
    %v1155 = vsel %vm1154, %v1138, %v1090
    %v1156 = vsel %vm1154, %v1139, %v1092
    %v1157 = vsel %vm1154, %v1140, %v1094
    %v1158 = vsel %vm1154, %v1141, %v1096
    %v1159 = vsel %vm1154, %v1142, %v1098
    %v1160 = vsel %vm1154, %v1143, %v1100
    %v1161 = vsel %vm1154, %v1144, %v1102
    %v1162 = vsel %vm1154, %v1145, %v1104
    %v1163 = vsel %vm1154, %v1146, %v1106
    %v1164 = vsel %vm1154, %v1147, %v1108
    %v1165 = vsel %vm1154, %v1148, %v1110
    %v1166 = vsel %vm1154, %v1149, %v1112
    %v1167 = vsel %vm1154, %v1150, %v1114
    %v1168 = vsel %vm1154, %v1151, %v1116
    %v1169 = vsel %vm1154, %v1152, %v1118
    %v1170 = vsel %vm1154, %v1153, %v1120
    %vm1171 = vcmask 39936
    %v1172 = vsel %vm1171, %v1155, 0.0
    %v1173 = vsel %vm1171, %v1156, 0.0
    %v1174 = vsel %vm1171, %v1157, 0.0
    %v1175 = vsel %vm1171, %v1158, 0.0
    %v1176 = vsel %vm1171, %v1159, 0.0
    %v1177 = vsel %vm1171, %v1160, 0.0
    %v1178 = vsel %vm1171, %v1161, 0.0
    %v1179 = vsel %vm1171, %v1162, 0.0
    %v1180 = vsel %vm1171, %v1163, 0.0
    %v1181 = vsel %vm1171, %v1164, 0.0
    %v1182 = vsel %vm1171, %v1165, 0.0
    %v1183 = vsel %vm1171, %v1166, 0.0
    %v1184 = vsel %vm1171, %v1167, 0.0
    %v1185 = vsel %vm1171, %v1168, 0.0
    %v1186 = vsel %vm1171, %v1169, 0.0
    %v1187 = vsel %vm1171, %v1170, 0.0
    %1188 = vxpose.xlu0.b32.start [1/16] %v1172, 128
    %1189 = vxpose.xlu0.b32.cont [2/16] %v1173, 128
    %1190 = vxpose.xlu0.b32.cont [3/16] %v1174, 128
    %1191 = vxpose.xlu0.b32.cont [4/16] %v1175, 128
    %1192 = vxpose.xlu0.b32.cont [5/16] %v1176, 128
    %1193 = vxpose.xlu0.b32.cont [6/16] %v1177, 128
    %1194 = vxpose.xlu0.b32.cont [7/16] %v1178, 128
    %1195 = vxpose.xlu0.b32.cont [8/16] %v1179, 128
    %1196 = vxpose.xlu0.b32.cont [9/16] %v1180, 128
    %1197 = vxpose.xlu0.b32.cont [10/16] %v1181, 128
    %1198 = vxpose.xlu0.b32.cont [11/16] %v1182, 128
    %1199 = vxpose.xlu0.b32.cont [12/16] %v1183, 128
    %1200 = vxpose.xlu0.b32.cont [13/16] %v1184, 128
    %1201 = vxpose.xlu0.b32.cont [14/16] %v1185, 128
    %1202 = vxpose.xlu0.b32.cont [15/16] %v1186, 128
    %1203 = vxpose.xlu0.b32.end [16/16] %v1187, 128
    %v1204 = vpop.trf.xlu0
    %v1205 = vpop.trf.xlu0
    %v1206 = vpop.trf.xlu0
    %v1207 = vpop.trf.xlu0
    %v1208 = vpop.trf.xlu0
    %v1209 = vpop.trf.xlu0
    %v1210 = vpop.trf.xlu0
    %v1211 = vpop.trf.xlu0
    %v1212 = vpop.trf.xlu0
    %v1213 = vpop.trf.xlu0
    %v1214 = vpop.trf.xlu0
    %v1215 = vpop.trf.xlu0
    %v1216 = vpop.trf.xlu0
    %v1217 = vpop.trf.xlu0
    %v1218 = vpop.trf.xlu0
    %v1219 = vpop.trf.xlu0
    %1220 = vst [vmem:[#allocation2] sm:$0xff] %v1204
    // Predicated region
    $region30: #{tpu_custom_call.1} parent=1 // pred_check
      _
    $region31: #{tpu_custom_call.1} parent=1 // pred_check_branch
      %1222 = sbr.rel (0) target = $region33
    $region32: #{tpu_custom_call.1} parent=1 // pred_region
      %s1224 = ssub.s32 128, 128
      %1225 = vsyncadd [#allocation3], %s1224
      %s1227 = sshll.u32 [#allocation2], 4
      %s1228 = int_to_ptr.vmem [resolvable:$true] %s1227
      %1230 = dma.vmem_to_hbm [thread:$0]  %s1228, 128, %s7, [#allocation3]
    $region33: #{tpu_custom_call.1} parent=1 // pred_fallthru
      _
    // Predicated region
    $region34: #{tpu_custom_call.1} parent=1 // pred_check
      _
    $region35: #{tpu_custom_call.1} parent=1 // pred_check_branch
      %1232 = sbr.rel (0) target = $region37
    $region36: #{tpu_custom_call.1} parent=1 // pred_region
      %1233 = dma.done [#allocation3], 128
    $region37: #{tpu_custom_call.1} parent=1 // pred_fallthru
      _
    %1234 = vsyncpa [#allocation3], 1

</llo_original>
